<compile_context>
chip_gen: v5e
topology: v5e:2x2
jax: 0.10.0
libtpu: 0.0.40
codegen_flags: <defaults>
</compile_context>

<pallas_src>
import functools

import jax
import jax.numpy as jnp
from jax.experimental import pallas as pl
from jax.experimental.pallas import tpu as pltpu

_LANES = 128
_TINY_IO_BYTES = 1 << 20                 # single grid step below this much I/O
_TILE_BUDGET_BYTES = 10 * 1024 * 1024    # double-buffered in+out tile budget
_DEFAULT_MAX_TS = 1024                   # 1024 * 128 = 131072 spatial elems/step


def _outconv_kernel(w_ref, b_ref, x_ref, o_ref, *, cin, cout):
    # w_ref: SMEM (Cout, Cin) scalars; b_ref: SMEM (Cout,) scalars
    # x_ref: VMEM (NB, Cin, TS, 128);  o_ref: VMEM (NB, Cout, TS, 128)
    nb = x_ref.shape[0]
    for n in range(nb):                # NB == 1 except on the tiny-input path
        for co in range(cout):         # fully unrolled (small static channels)
            acc = w_ref[co, 0] * x_ref[n, 0]
            for ci in range(1, cin):   # VPU broadcast-FMAs on dense (TS,128) slabs
                acc = acc + w_ref[co, ci] * x_ref[n, ci]
            # Direct per-channel store: no concatenate, no sublane relayout.
            o_ref[n, co] = (acc + b_ref[co]).astype(o_ref.dtype)


def outconv_pallas(x_nchw, weight, bias, *, tile_sublanes=None):
    """1x1 conv forward, matches nn.Conv2d(in_ch, out_ch, kernel_size=1).

    x_nchw: (N, Cin, H, W)
    weight: (Cout, Cin, 1, 1)  (PyTorch conv weight layout)
    bias:   (Cout,)
    returns (N, Cout, H, W), same dtype as x.

    tile_sublanes: optional override of the spatial tile height TS in sublane
    rows (rounded down to a multiple of 8); mainly for testing partial tiles.
    """
    N, Cin, H, W = x_nchw.shape
    Cout = weight.shape[0]
    M = H * W

    # Free views — stay channels-first, no NCHW<->NHWC transposes.
    x3 = x_nchw.reshape(N, Cin, M)
    w_mat = weight.reshape(Cout, Cin).astype(jnp.float32)
    b_vec = bias.reshape(Cout).astype(jnp.float32)

    # Pad the flattened spatial axis to a multiple of 128 lanes (no-op when
    # already aligned); the padded tail is computed but discarded at the end.
    M_pad = -(-M // _LANES) * _LANES
    if M_pad != M:
        x3 = jnp.pad(x3, ((0, 0), (0, 0), (0, M_pad - M)))
    MB = M_pad // _LANES
    x4 = x3.reshape(N, Cin, MB, _LANES)   # spatial -> (sublane, lane) dense

    io_bytes = N * (Cin + Cout) * M_pad * 4
    if tile_sublanes is None and io_bytes <= _TINY_IO_BYTES:
        # Tiny problem: one grid step covering everything (per-step overhead
        # completely dominates at this scale).
        NB, TS = N, MB
    else:
        NB = 1
        if tile_sublanes is not None:
            TS = max(8, (int(tile_sublanes) // 8) * 8)
        else:
            # Double-buffered in+out bytes per sublane row of the tile.
            per_ts = 2 * (Cin + Cout) * _LANES * 4
            TS = max(8, min(_DEFAULT_MAX_TS,
                            (_TILE_BUDGET_BYTES // per_ts) // 8 * 8))
        if N == 1 and MB > 8:
            # Keep >= 2 grid steps so both v7x TensorCores get work.
            half = (-(-MB // 2) + 7) // 8 * 8
            TS = min(TS, half)
        if TS >= MB:
            TS = MB   # full-extent block is always legal

    grid = (N // NB, pl.cdiv(MB, TS))
    kernel = functools.partial(_outconv_kernel, cin=Cin, cout=Cout)

    cost = pl.CostEstimate(
        flops=2 * N * M_pad * Cin * Cout,
        transcendentals=0,
        bytes_accessed=4 * (N * M_pad * (Cin + Cout) + Cout * Cin + Cout),
    )

    out4 = pl.pallas_call(
        kernel,
        out_shape=jax.ShapeDtypeStruct((N, Cout, MB, _LANES), x_nchw.dtype),
        grid_spec=pltpu.PrefetchScalarGridSpec(
            num_scalar_prefetch=0,
            grid=grid,
            in_specs=[
                pl.BlockSpec(memory_space=pltpu.MemorySpace.SMEM),  # weight (Cout,Cin)
                pl.BlockSpec(memory_space=pltpu.MemorySpace.SMEM),  # bias   (Cout,)
                pl.BlockSpec((NB, Cin, TS, _LANES), lambda n, m: (n, 0, m, 0)),
            ],
            out_specs=pl.BlockSpec((NB, Cout, TS, _LANES), lambda n, m: (n, 0, m, 0)),
        ),
        compiler_params=pltpu.CompilerParams(
            dimension_semantics=("parallel", "parallel"),
        ),
        cost_estimate=cost,
    )(w_mat, b_vec, x4)

    out3 = out4.reshape(N, Cout, M_pad)
    if M_pad != M:
        out3 = out3[:, :, :M]
    return out3.reshape(N, Cout, H, W)


def _reference(x, weight, bias):
    Cout, Cin = weight.shape[0], weight.shape[1]
    return (jnp.einsum("nchw,oc->nohw", x, weight.reshape(Cout, Cin))
            + bias[None, :, None, None])


if __name__ == "__main__":
    key = jax.random.PRNGKey(0)
    kx, kw, kb, kx2, kx3 = jax.random.split(key, 5)

    # OutConv(in_channels=4, out_channels=3), input NCHW (2, 4, 16, 16)
    N, Cin, Cout, Hs, Ws = 2, 4, 3, 16, 16
    x = jax.random.normal(kx, (N, Cin, Hs, Ws), dtype=jnp.float32)

    # Deterministic params mimicking PyTorch Conv2d default init (+/- 1/sqrt(fan_in))
    fan_in = Cin * 1 * 1
    bound = 1.0 / (fan_in ** 0.5)
    weight = jax.random.uniform(kw, (Cout, Cin, 1, 1), jnp.float32, -bound, bound)
    bias = jax.random.uniform(kb, (Cout,), jnp.float32, -bound, bound)

    # 1) Spec-sized case (tiny path: single grid step covering all of N).
    y = outconv_pallas(x, weight, bias)
    jax.block_until_ready(y)
    assert y.shape == (N, Cout, Hs, Ws)
    assert jnp.allclose(y, _reference(x, weight, bias), atol=1e-5, rtol=1e-5)

    # 2) Default auto-tiled path (larger input, M % 128 == 0).
    x_big = jax.random.normal(kx2, (2, Cin, 192, 192), dtype=jnp.float32)
    y_big = outconv_pallas(x_big, weight, bias)
    jax.block_until_ready(y_big)
    assert jnp.allclose(y_big, _reference(x_big, weight, bias), atol=1e-5, rtol=1e-5)

    # 3) Forced small tiles: exercises M % 128 != 0 padding, a partial last
    #    spatial tile, and the N == 1 two-step split.
    x_odd = jax.random.normal(kx3, (1, Cin, 120, 100), dtype=jnp.float32)
    y_odd = outconv_pallas(x_odd, weight, bias, tile_sublanes=32)
    jax.block_until_ready(y_odd)
    assert jnp.allclose(y_odd, _reference(x_odd, weight, bias), atol=1e-5, rtol=1e-5)

    print("KERNEL_OK")
</pallas_src>

<mosaic_0001>
module attributes {stable_mosaic.version = 11 : i64} {
  func.func @_outconv_kernel(%arg0: i32, %arg1: i32, %arg2: memref<3x4xf32, #tpu.memory_space<smem>>, %arg3: memref<3xf32, #tpu.memory_space<smem>>, %arg4: memref<2x4x2x128xf32, #tpu.memory_space<vmem>>, %arg5: memref<2x3x2x128xf32, #tpu.memory_space<vmem>>) attributes {dimension_semantics = [#tpu.dimension_semantics<parallel>, #tpu.dimension_semantics<parallel>], iteration_bounds = array<i64: 1, 1>, scalar_prefetch = 0 : i64, scratch_operands = 0 : i64, tpu.core_type = #tpu.core_type<tc>, window_params = [{transform_indices = @transform_0, window_bounds = array<i64: 3, 4>}, {transform_indices = @transform_1, window_bounds = array<i64: 3>}, {transform_indices = @transform_2, window_bounds = array<i64: 2, 4, 2, 128>}, {transform_indices = @transform_3, window_bounds = array<i64: 2, 3, 2, 128>}]} {
    %c0 = arith.constant 0 : index
    %c0_0 = arith.constant 0 : index
    %0 = memref.load %arg2[%c0, %c0_0] : memref<3x4xf32, #tpu.memory_space<smem>>
    %c0_1 = arith.constant 0 : index
    %c0_2 = arith.constant 0 : index
    %c0_3 = arith.constant 0 : index
    %c0_4 = arith.constant 0 : index
    %1 = vector.load %arg4[%c0_1, %c0_2, %c0_3, %c0_4] : memref<2x4x2x128xf32, #tpu.memory_space<vmem>>, vector<1x1x2x128xf32>
    %2 = vector.shape_cast %1 : vector<1x1x2x128xf32> to vector<2x128xf32>
    %3 = vector.broadcast %0 : f32 to vector<2x128xf32>
    %4 = arith.mulf %3, %2 : vector<2x128xf32>
    %c0_5 = arith.constant 0 : index
    %c1 = arith.constant 1 : index
    %5 = memref.load %arg2[%c0_5, %c1] : memref<3x4xf32, #tpu.memory_space<smem>>
    %c0_6 = arith.constant 0 : index
    %c1_7 = arith.constant 1 : index
    %c0_8 = arith.constant 0 : index
    %c0_9 = arith.constant 0 : index
    %6 = vector.load %arg4[%c0_6, %c1_7, %c0_8, %c0_9] : memref<2x4x2x128xf32, #tpu.memory_space<vmem>>, vector<1x1x2x128xf32>
    %7 = vector.shape_cast %6 : vector<1x1x2x128xf32> to vector<2x128xf32>
    %8 = vector.broadcast %5 : f32 to vector<2x128xf32>
    %9 = arith.mulf %8, %7 : vector<2x128xf32>
    %10 = arith.addf %4, %9 : vector<2x128xf32>
    %c0_10 = arith.constant 0 : index
    %c2 = arith.constant 2 : index
    %11 = memref.load %arg2[%c0_10, %c2] : memref<3x4xf32, #tpu.memory_space<smem>>
    %c0_11 = arith.constant 0 : index
    %c2_12 = arith.constant 2 : index
    %c0_13 = arith.constant 0 : index
    %c0_14 = arith.constant 0 : index
    %12 = vector.load %arg4[%c0_11, %c2_12, %c0_13, %c0_14] : memref<2x4x2x128xf32, #tpu.memory_space<vmem>>, vector<1x1x2x128xf32>
    %13 = vector.shape_cast %12 : vector<1x1x2x128xf32> to vector<2x128xf32>
    %14 = vector.broadcast %11 : f32 to vector<2x128xf32>
    %15 = arith.mulf %14, %13 : vector<2x128xf32>
    %16 = arith.addf %10, %15 : vector<2x128xf32>
    %c0_15 = arith.constant 0 : index
    %c3 = arith.constant 3 : index
    %17 = memref.load %arg2[%c0_15, %c3] : memref<3x4xf32, #tpu.memory_space<smem>>
    %c0_16 = arith.constant 0 : index
    %c3_17 = arith.constant 3 : index
    %c0_18 = arith.constant 0 : index
    %c0_19 = arith.constant 0 : index
    %18 = vector.load %arg4[%c0_16, %c3_17, %c0_18, %c0_19] : memref<2x4x2x128xf32, #tpu.memory_space<vmem>>, vector<1x1x2x128xf32>
    %19 = vector.shape_cast %18 : vector<1x1x2x128xf32> to vector<2x128xf32>
    %20 = vector.broadcast %17 : f32 to vector<2x128xf32>
    %21 = arith.mulf %20, %19 : vector<2x128xf32>
    %22 = arith.addf %16, %21 : vector<2x128xf32>
    %c0_20 = arith.constant 0 : index
    %23 = memref.load %arg3[%c0_20] : memref<3xf32, #tpu.memory_space<smem>>
    %24 = vector.broadcast %23 : f32 to vector<2x128xf32>
    %25 = arith.addf %22, %24 : vector<2x128xf32>
    %c0_21 = arith.constant 0 : index
    %c0_22 = arith.constant 0 : index
    %c0_23 = arith.constant 0 : index
    %c0_24 = arith.constant 0 : index
    %26 = vector.load %arg5[%c0_21, %c0_22, %c0_23, %c0_24] : memref<2x3x2x128xf32, #tpu.memory_space<vmem>>, vector<1x1x2x128xf32>
    %27 = vector.shape_cast %26 : vector<1x1x2x128xf32> to vector<2x128xf32>
    %28 = vector.shape_cast %25 : vector<2x128xf32> to vector<1x1x2x128xf32>
    tpu.vector_store %arg5[%c0_21, %c0_22, %c0_23, %c0_24], %28 {strides = array<i32>} : memref<2x3x2x128xf32, #tpu.memory_space<vmem>>, vector<1x1x2x128xf32>,
    %c1_25 = arith.constant 1 : index
    %c0_26 = arith.constant 0 : index
    %29 = memref.load %arg2[%c1_25, %c0_26] : memref<3x4xf32, #tpu.memory_space<smem>>
    %c0_27 = arith.constant 0 : index
    %c0_28 = arith.constant 0 : index
    %c0_29 = arith.constant 0 : index
    %c0_30 = arith.constant 0 : index
    %30 = vector.load %arg4[%c0_27, %c0_28, %c0_29, %c0_30] : memref<2x4x2x128xf32, #tpu.memory_space<vmem>>, vector<1x1x2x128xf32>
    %31 = vector.shape_cast %30 : vector<1x1x2x128xf32> to vector<2x128xf32>
    %32 = vector.broadcast %29 : f32 to vector<2x128xf32>
    %33 = arith.mulf %32, %31 : vector<2x128xf32>
    %c1_31 = arith.constant 1 : index
    %c1_32 = arith.constant 1 : index
    %34 = memref.load %arg2[%c1_31, %c1_32] : memref<3x4xf32, #tpu.memory_space<smem>>
    %c0_33 = arith.constant 0 : index
    %c1_34 = arith.constant 1 : index
    %c0_35 = arith.constant 0 : index
    %c0_36 = arith.constant 0 : index
    %35 = vector.load %arg4[%c0_33, %c1_34, %c0_35, %c0_36] : memref<2x4x2x128xf32, #tpu.memory_space<vmem>>, vector<1x1x2x128xf32>
    %36 = vector.shape_cast %35 : vector<1x1x2x128xf32> to vector<2x128xf32>
    %37 = vector.broadcast %34 : f32 to vector<2x128xf32>
    %38 = arith.mulf %37, %36 : vector<2x128xf32>
    %39 = arith.addf %33, %38 : vector<2x128xf32>
    %c1_37 = arith.constant 1 : index
    %c2_38 = arith.constant 2 : index
    %40 = memref.load %arg2[%c1_37, %c2_38] : memref<3x4xf32, #tpu.memory_space<smem>>
    %c0_39 = arith.constant 0 : index
    %c2_40 = arith.constant 2 : index
    %c0_41 = arith.constant 0 : index
    %c0_42 = arith.constant 0 : index
    %41 = vector.load %arg4[%c0_39, %c2_40, %c0_41, %c0_42] : memref<2x4x2x128xf32, #tpu.memory_space<vmem>>, vector<1x1x2x128xf32>
    %42 = vector.shape_cast %41 : vector<1x1x2x128xf32> to vector<2x128xf32>
    %43 = vector.broadcast %40 : f32 to vector<2x128xf32>
    %44 = arith.mulf %43, %42 : vector<2x128xf32>
    %45 = arith.addf %39, %44 : vector<2x128xf32>
    %c1_43 = arith.constant 1 : index
    %c3_44 = arith.constant 3 : index
    %46 = memref.load %arg2[%c1_43, %c3_44] : memref<3x4xf32, #tpu.memory_space<smem>>
    %c0_45 = arith.constant 0 : index
    %c3_46 = arith.constant 3 : index
    %c0_47 = arith.constant 0 : index
    %c0_48 = arith.constant 0 : index
    %47 = vector.load %arg4[%c0_45, %c3_46, %c0_47, %c0_48] : memref<2x4x2x128xf32, #tpu.memory_space<vmem>>, vector<1x1x2x128xf32>
    %48 = vector.shape_cast %47 : vector<1x1x2x128xf32> to vector<2x128xf32>
    %49 = vector.broadcast %46 : f32 to vector<2x128xf32>
    %50 = arith.mulf %49, %48 : vector<2x128xf32>
    %51 = arith.addf %45, %50 : vector<2x128xf32>
    %c1_49 = arith.constant 1 : index
    %52 = memref.load %arg3[%c1_49] : memref<3xf32, #tpu.memory_space<smem>>
    %53 = vector.broadcast %52 : f32 to vector<2x128xf32>
    %54 = arith.addf %51, %53 : vector<2x128xf32>
    %c0_50 = arith.constant 0 : index
    %c1_51 = arith.constant 1 : index
    %c0_52 = arith.constant 0 : index
    %c0_53 = arith.constant 0 : index
    %55 = vector.load %arg5[%c0_50, %c1_51, %c0_52, %c0_53] : memref<2x3x2x128xf32, #tpu.memory_space<vmem>>, vector<1x1x2x128xf32>
    %56 = vector.shape_cast %55 : vector<1x1x2x128xf32> to vector<2x128xf32>
    %57 = vector.shape_cast %54 : vector<2x128xf32> to vector<1x1x2x128xf32>
    tpu.vector_store %arg5[%c0_50, %c1_51, %c0_52, %c0_53], %57 {strides = array<i32>} : memref<2x3x2x128xf32, #tpu.memory_space<vmem>>, vector<1x1x2x128xf32>,
    %c2_54 = arith.constant 2 : index
    %c0_55 = arith.constant 0 : index
    %58 = memref.load %arg2[%c2_54, %c0_55] : memref<3x4xf32, #tpu.memory_space<smem>>
    %c0_56 = arith.constant 0 : index
    %c0_57 = arith.constant 0 : index
    %c0_58 = arith.constant 0 : index
    %c0_59 = arith.constant 0 : index
    %59 = vector.load %arg4[%c0_56, %c0_57, %c0_58, %c0_59] : memref<2x4x2x128xf32, #tpu.memory_space<vmem>>, vector<1x1x2x128xf32>
    %60 = vector.shape_cast %59 : vector<1x1x2x128xf32> to vector<2x128xf32>
    %61 = vector.broadcast %58 : f32 to vector<2x128xf32>
    %62 = arith.mulf %61, %60 : vector<2x128xf32>
    %c2_60 = arith.constant 2 : index
    %c1_61 = arith.constant 1 : index
    %63 = memref.load %arg2[%c2_60, %c1_61] : memref<3x4xf32, #tpu.memory_space<smem>>
    %c0_62 = arith.constant 0 : index
    %c1_63 = arith.constant 1 : index
    %c0_64 = arith.constant 0 : index
    %c0_65 = arith.constant 0 : index
    %64 = vector.load %arg4[%c0_62, %c1_63, %c0_64, %c0_65] : memref<2x4x2x128xf32, #tpu.memory_space<vmem>>, vector<1x1x2x128xf32>
    %65 = vector.shape_cast %64 : vector<1x1x2x128xf32> to vector<2x128xf32>
    %66 = vector.broadcast %63 : f32 to vector<2x128xf32>
    %67 = arith.mulf %66, %65 : vector<2x128xf32>
    %68 = arith.addf %62, %67 : vector<2x128xf32>
    %c2_66 = arith.constant 2 : index
    %c2_67 = arith.constant 2 : index
    %69 = memref.load %arg2[%c2_66, %c2_67] : memref<3x4xf32, #tpu.memory_space<smem>>
    %c0_68 = arith.constant 0 : index
    %c2_69 = arith.constant 2 : index
    %c0_70 = arith.constant 0 : index
    %c0_71 = arith.constant 0 : index
    %70 = vector.load %arg4[%c0_68, %c2_69, %c0_70, %c0_71] : memref<2x4x2x128xf32, #tpu.memory_space<vmem>>, vector<1x1x2x128xf32>
    %71 = vector.shape_cast %70 : vector<1x1x2x128xf32> to vector<2x128xf32>
    %72 = vector.broadcast %69 : f32 to vector<2x128xf32>
    %73 = arith.mulf %72, %71 : vector<2x128xf32>
    %74 = arith.addf %68, %73 : vector<2x128xf32>
    %c2_72 = arith.constant 2 : index
    %c3_73 = arith.constant 3 : index
    %75 = memref.load %arg2[%c2_72, %c3_73] : memref<3x4xf32, #tpu.memory_space<smem>>
    %c0_74 = arith.constant 0 : index
    %c3_75 = arith.constant 3 : index
    %c0_76 = arith.constant 0 : index
    %c0_77 = arith.constant 0 : index
    %76 = vector.load %arg4[%c0_74, %c3_75, %c0_76, %c0_77] : memref<2x4x2x128xf32, #tpu.memory_space<vmem>>, vector<1x1x2x128xf32>
    %77 = vector.shape_cast %76 : vector<1x1x2x128xf32> to vector<2x128xf32>
    %78 = vector.broadcast %75 : f32 to vector<2x128xf32>
    %79 = arith.mulf %78, %77 : vector<2x128xf32>
    %80 = arith.addf %74, %79 : vector<2x128xf32>
    %c2_78 = arith.constant 2 : index
    %81 = memref.load %arg3[%c2_78] : memref<3xf32, #tpu.memory_space<smem>>
    %82 = vector.broadcast %81 : f32 to vector<2x128xf32>
    %83 = arith.addf %80, %82 : vector<2x128xf32>
    %c0_79 = arith.constant 0 : index
    %c2_80 = arith.constant 2 : index
    %c0_81 = arith.constant 0 : index
    %c0_82 = arith.constant 0 : index
    %84 = vector.load %arg5[%c0_79, %c2_80, %c0_81, %c0_82] : memref<2x3x2x128xf32, #tpu.memory_space<vmem>>, vector<1x1x2x128xf32>
    %85 = vector.shape_cast %84 : vector<1x1x2x128xf32> to vector<2x128xf32>
    %86 = vector.shape_cast %83 : vector<2x128xf32> to vector<1x1x2x128xf32>
    tpu.vector_store %arg5[%c0_79, %c2_80, %c0_81, %c0_82], %86 {strides = array<i32>} : memref<2x3x2x128xf32, #tpu.memory_space<vmem>>, vector<1x1x2x128xf32>,
    %c0_83 = arith.constant 0 : index
    %c0_84 = arith.constant 0 : index
    %87 = memref.load %arg2[%c0_83, %c0_84] : memref<3x4xf32, #tpu.memory_space<smem>>
    %c1_85 = arith.constant 1 : index
    %c0_86 = arith.constant 0 : index
    %c0_87 = arith.constant 0 : index
    %c0_88 = arith.constant 0 : index
    %88 = vector.load %arg4[%c1_85, %c0_86, %c0_87, %c0_88] : memref<2x4x2x128xf32, #tpu.memory_space<vmem>>, vector<1x1x2x128xf32>
    %89 = vector.shape_cast %88 : vector<1x1x2x128xf32> to vector<2x128xf32>
    %90 = vector.broadcast %87 : f32 to vector<2x128xf32>
    %91 = arith.mulf %90, %89 : vector<2x128xf32>
    %c0_89 = arith.constant 0 : index
    %c1_90 = arith.constant 1 : index
    %92 = memref.load %arg2[%c0_89, %c1_90] : memref<3x4xf32, #tpu.memory_space<smem>>
    %c1_91 = arith.constant 1 : index
    %c1_92 = arith.constant 1 : index
    %c0_93 = arith.constant 0 : index
    %c0_94 = arith.constant 0 : index
    %93 = vector.load %arg4[%c1_91, %c1_92, %c0_93, %c0_94] : memref<2x4x2x128xf32, #tpu.memory_space<vmem>>, vector<1x1x2x128xf32>
    %94 = vector.shape_cast %93 : vector<1x1x2x128xf32> to vector<2x128xf32>
    %95 = vector.broadcast %92 : f32 to vector<2x128xf32>
    %96 = arith.mulf %95, %94 : vector<2x128xf32>
    %97 = arith.addf %91, %96 : vector<2x128xf32>
    %c0_95 = arith.constant 0 : index
    %c2_96 = arith.constant 2 : index
    %98 = memref.load %arg2[%c0_95, %c2_96] : memref<3x4xf32, #tpu.memory_space<smem>>
    %c1_97 = arith.constant 1 : index
    %c2_98 = arith.constant 2 : index
    %c0_99 = arith.constant 0 : index
    %c0_100 = arith.constant 0 : index
    %99 = vector.load %arg4[%c1_97, %c2_98, %c0_99, %c0_100] : memref<2x4x2x128xf32, #tpu.memory_space<vmem>>, vector<1x1x2x128xf32>
    %100 = vector.shape_cast %99 : vector<1x1x2x128xf32> to vector<2x128xf32>
    %101 = vector.broadcast %98 : f32 to vector<2x128xf32>
    %102 = arith.mulf %101, %100 : vector<2x128xf32>
    %103 = arith.addf %97, %102 : vector<2x128xf32>
    %c0_101 = arith.constant 0 : index
    %c3_102 = arith.constant 3 : index
    %104 = memref.load %arg2[%c0_101, %c3_102] : memref<3x4xf32, #tpu.memory_space<smem>>
    %c1_103 = arith.constant 1 : index
    %c3_104 = arith.constant 3 : index
    %c0_105 = arith.constant 0 : index
    %c0_106 = arith.constant 0 : index
    %105 = vector.load %arg4[%c1_103, %c3_104, %c0_105, %c0_106] : memref<2x4x2x128xf32, #tpu.memory_space<vmem>>, vector<1x1x2x128xf32>
    %106 = vector.shape_cast %105 : vector<1x1x2x128xf32> to vector<2x128xf32>
    %107 = vector.broadcast %104 : f32 to vector<2x128xf32>
    %108 = arith.mulf %107, %106 : vector<2x128xf32>
    %109 = arith.addf %103, %108 : vector<2x128xf32>
    %c0_107 = arith.constant 0 : index
    %110 = memref.load %arg3[%c0_107] : memref<3xf32, #tpu.memory_space<smem>>
    %111 = vector.broadcast %110 : f32 to vector<2x128xf32>
    %112 = arith.addf %109, %111 : vector<2x128xf32>
    %c1_108 = arith.constant 1 : index
    %c0_109 = arith.constant 0 : index
    %c0_110 = arith.constant 0 : index
    %c0_111 = arith.constant 0 : index
    %113 = vector.load %arg5[%c1_108, %c0_109, %c0_110, %c0_111] : memref<2x3x2x128xf32, #tpu.memory_space<vmem>>, vector<1x1x2x128xf32>
    %114 = vector.shape_cast %113 : vector<1x1x2x128xf32> to vector<2x128xf32>
    %115 = vector.shape_cast %112 : vector<2x128xf32> to vector<1x1x2x128xf32>
    tpu.vector_store %arg5[%c1_108, %c0_109, %c0_110, %c0_111], %115 {strides = array<i32>} : memref<2x3x2x128xf32, #tpu.memory_space<vmem>>, vector<1x1x2x128xf32>,
    %c1_112 = arith.constant 1 : index
    %c0_113 = arith.constant 0 : index
    %116 = memref.load %arg2[%c1_112, %c0_113] : memref<3x4xf32, #tpu.memory_space<smem>>
    %c1_114 = arith.constant 1 : index
    %c0_115 = arith.constant 0 : index
    %c0_116 = arith.constant 0 : index
    %c0_117 = arith.constant 0 : index
    %117 = vector.load %arg4[%c1_114, %c0_115, %c0_116, %c0_117] : memref<2x4x2x128xf32, #tpu.memory_space<vmem>>, vector<1x1x2x128xf32>
    %118 = vector.shape_cast %117 : vector<1x1x2x128xf32> to vector<2x128xf32>
    %119 = vector.broadcast %116 : f32 to vector<2x128xf32>
    %120 = arith.mulf %119, %118 : vector<2x128xf32>
    %c1_118 = arith.constant 1 : index
    %c1_119 = arith.constant 1 : index
    %121 = memref.load %arg2[%c1_118, %c1_119] : memref<3x4xf32, #tpu.memory_space<smem>>
    %c1_120 = arith.constant 1 : index
    %c1_121 = arith.constant 1 : index
    %c0_122 = arith.constant 0 : index
    %c0_123 = arith.constant 0 : index
    %122 = vector.load %arg4[%c1_120, %c1_121, %c0_122, %c0_123] : memref<2x4x2x128xf32, #tpu.memory_space<vmem>>, vector<1x1x2x128xf32>
    %123 = vector.shape_cast %122 : vector<1x1x2x128xf32> to vector<2x128xf32>
    %124 = vector.broadcast %121 : f32 to vector<2x128xf32>
    %125 = arith.mulf %124, %123 : vector<2x128xf32>
    %126 = arith.addf %120, %125 : vector<2x128xf32>
    %c1_124 = arith.constant 1 : index
    %c2_125 = arith.constant 2 : index
    %127 = memref.load %arg2[%c1_124, %c2_125] : memref<3x4xf32, #tpu.memory_space<smem>>
    %c1_126 = arith.constant 1 : index
    %c2_127 = arith.constant 2 : index
    %c0_128 = arith.constant 0 : index
    %c0_129 = arith.constant 0 : index
    %128 = vector.load %arg4[%c1_126, %c2_127, %c0_128, %c0_129] : memref<2x4x2x128xf32, #tpu.memory_space<vmem>>, vector<1x1x2x128xf32>
    %129 = vector.shape_cast %128 : vector<1x1x2x128xf32> to vector<2x128xf32>
    %130 = vector.broadcast %127 : f32 to vector<2x128xf32>
    %131 = arith.mulf %130, %129 : vector<2x128xf32>
    %132 = arith.addf %126, %131 : vector<2x128xf32>
    %c1_130 = arith.constant 1 : index
    %c3_131 = arith.constant 3 : index
    %133 = memref.load %arg2[%c1_130, %c3_131] : memref<3x4xf32, #tpu.memory_space<smem>>
    %c1_132 = arith.constant 1 : index
    %c3_133 = arith.constant 3 : index
    %c0_134 = arith.constant 0 : index
    %c0_135 = arith.constant 0 : index
    %134 = vector.load %arg4[%c1_132, %c3_133, %c0_134, %c0_135] : memref<2x4x2x128xf32, #tpu.memory_space<vmem>>, vector<1x1x2x128xf32>
    %135 = vector.shape_cast %134 : vector<1x1x2x128xf32> to vector<2x128xf32>
    %136 = vector.broadcast %133 : f32 to vector<2x128xf32>
    %137 = arith.mulf %136, %135 : vector<2x128xf32>
    %138 = arith.addf %132, %137 : vector<2x128xf32>
    %c1_136 = arith.constant 1 : index
    %139 = memref.load %arg3[%c1_136] : memref<3xf32, #tpu.memory_space<smem>>
    %140 = vector.broadcast %139 : f32 to vector<2x128xf32>
    %141 = arith.addf %138, %140 : vector<2x128xf32>
    %c1_137 = arith.constant 1 : index
    %c1_138 = arith.constant 1 : index
    %c0_139 = arith.constant 0 : index
    %c0_140 = arith.constant 0 : index
    %142 = vector.load %arg5[%c1_137, %c1_138, %c0_139, %c0_140] : memref<2x3x2x128xf32, #tpu.memory_space<vmem>>, vector<1x1x2x128xf32>
    %143 = vector.shape_cast %142 : vector<1x1x2x128xf32> to vector<2x128xf32>
    %144 = vector.shape_cast %141 : vector<2x128xf32> to vector<1x1x2x128xf32>
    tpu.vector_store %arg5[%c1_137, %c1_138, %c0_139, %c0_140], %144 {strides = array<i32>} : memref<2x3x2x128xf32, #tpu.memory_space<vmem>>, vector<1x1x2x128xf32>,
    %c2_141 = arith.constant 2 : index
    %c0_142 = arith.constant 0 : index
    %145 = memref.load %arg2[%c2_141, %c0_142] : memref<3x4xf32, #tpu.memory_space<smem>>
    %c1_143 = arith.constant 1 : index
    %c0_144 = arith.constant 0 : index
    %c0_145 = arith.constant 0 : index
    %c0_146 = arith.constant 0 : index
    %146 = vector.load %arg4[%c1_143, %c0_144, %c0_145, %c0_146] : memref<2x4x2x128xf32, #tpu.memory_space<vmem>>, vector<1x1x2x128xf32>
    %147 = vector.shape_cast %146 : vector<1x1x2x128xf32> to vector<2x128xf32>
    %148 = vector.broadcast %145 : f32 to vector<2x128xf32>
    %149 = arith.mulf %148, %147 : vector<2x128xf32>
    %c2_147 = arith.constant 2 : index
    %c1_148 = arith.constant 1 : index
    %150 = memref.load %arg2[%c2_147, %c1_148] : memref<3x4xf32, #tpu.memory_space<smem>>
    %c1_149 = arith.constant 1 : index
    %c1_150 = arith.constant 1 : index
    %c0_151 = arith.constant 0 : index
    %c0_152 = arith.constant 0 : index
    %151 = vector.load %arg4[%c1_149, %c1_150, %c0_151, %c0_152] : memref<2x4x2x128xf32, #tpu.memory_space<vmem>>, vector<1x1x2x128xf32>
    %152 = vector.shape_cast %151 : vector<1x1x2x128xf32> to vector<2x128xf32>
    %153 = vector.broadcast %150 : f32 to vector<2x128xf32>
    %154 = arith.mulf %153, %152 : vector<2x128xf32>
    %155 = arith.addf %149, %154 : vector<2x128xf32>
    %c2_153 = arith.constant 2 : index
    %c2_154 = arith.constant 2 : index
    %156 = memref.load %arg2[%c2_153, %c2_154] : memref<3x4xf32, #tpu.memory_space<smem>>
    %c1_155 = arith.constant 1 : index
    %c2_156 = arith.constant 2 : index
    %c0_157 = arith.constant 0 : index
    %c0_158 = arith.constant 0 : index
    %157 = vector.load %arg4[%c1_155, %c2_156, %c0_157, %c0_158] : memref<2x4x2x128xf32, #tpu.memory_space<vmem>>, vector<1x1x2x128xf32>
    %158 = vector.shape_cast %157 : vector<1x1x2x128xf32> to vector<2x128xf32>
    %159 = vector.broadcast %156 : f32 to vector<2x128xf32>
    %160 = arith.mulf %159, %158 : vector<2x128xf32>
    %161 = arith.addf %155, %160 : vector<2x128xf32>
    %c2_159 = arith.constant 2 : index
    %c3_160 = arith.constant 3 : index
    %162 = memref.load %arg2[%c2_159, %c3_160] : memref<3x4xf32, #tpu.memory_space<smem>>
    %c1_161 = arith.constant 1 : index
    %c3_162 = arith.constant 3 : index
    %c0_163 = arith.constant 0 : index
    %c0_164 = arith.constant 0 : index
    %163 = vector.load %arg4[%c1_161, %c3_162, %c0_163, %c0_164] : memref<2x4x2x128xf32, #tpu.memory_space<vmem>>, vector<1x1x2x128xf32>
    %164 = vector.shape_cast %163 : vector<1x1x2x128xf32> to vector<2x128xf32>
    %165 = vector.broadcast %162 : f32 to vector<2x128xf32>
    %166 = arith.mulf %165, %164 : vector<2x128xf32>
    %167 = arith.addf %161, %166 : vector<2x128xf32>
    %c2_165 = arith.constant 2 : index
    %168 = memref.load %arg3[%c2_165] : memref<3xf32, #tpu.memory_space<smem>>
    %169 = vector.broadcast %168 : f32 to vector<2x128xf32>
    %170 = arith.addf %167, %169 : vector<2x128xf32>
    %c1_166 = arith.constant 1 : index
    %c2_167 = arith.constant 2 : index
    %c0_168 = arith.constant 0 : index
    %c0_169 = arith.constant 0 : index
    %171 = vector.load %arg5[%c1_166, %c2_167, %c0_168, %c0_169] : memref<2x3x2x128xf32, #tpu.memory_space<vmem>>, vector<1x1x2x128xf32>
    %172 = vector.shape_cast %171 : vector<1x1x2x128xf32> to vector<2x128xf32>
    %173 = vector.shape_cast %170 : vector<2x128xf32> to vector<1x1x2x128xf32>
    tpu.vector_store %arg5[%c1_166, %c2_167, %c0_168, %c0_169], %173 {strides = array<i32>} : memref<2x3x2x128xf32, #tpu.memory_space<vmem>>, vector<1x1x2x128xf32>,
    return
  }
  func.func @transform_0(%arg0: i32, %arg1: i32) -> (i32, i32) {
    %c0_i32 = arith.constant 0 : i32
    %c0_i32_0 = arith.constant 0 : i32
    %c0_i32_1 = arith.constant 0 : i32
    return %c0_i32, %c0_i32_0 : i32, i32
  }
  func.func @transform_1(%arg0: i32, %arg1: i32) -> i32 {
    %c0_i32 = arith.constant 0 : i32
    %c0_i32_0 = arith.constant 0 : i32
    return %c0_i32 : i32
  }
  func.func @transform_2(%arg0: i32, %arg1: i32) -> (i32, i32, i32, i32) {
    %c0_i32 = arith.constant 0 : i32
    %c0_i32_0 = arith.constant 0 : i32
    %c0_i32_1 = arith.constant 0 : i32
    return %arg0, %c0_i32, %arg1, %c0_i32_0 : i32, i32, i32, i32
  }
  func.func @transform_3(%arg0: i32, %arg1: i32) -> (i32, i32, i32, i32) {
    %c0_i32 = arith.constant 0 : i32
    %c0_i32_0 = arith.constant 0 : i32
    %c0_i32_1 = arith.constant 0 : i32
    return %arg0, %c0_i32, %arg1, %c0_i32_0 : i32, i32, i32, i32
  }
}

</mosaic_0001>

<llo_original>
// kernel: tpu_custom_call.1
$region0: #{tpu_custom_call.1}
  #allocation0 [shape = 'u32[]', space=smem, size = 0x4, offset = 0x4, fixed_abs, tag = 'smem constant byte address 0x4 - core index']
  #allocation1 [shape = 'u32[72,128]{1,0:T(1,128)}', space=vmem, size = 0x9000, scoped, tag = 'internal scratch']
  %s0 = inlined_call_operand.hbm [shape: f32[3,4], index: 0, kind: input, shape index: {}]
  %s1 = inlined_call_operand.hbm [shape: f32[3], index: 1, kind: input, shape index: {}]
  %s2 = inlined_call_operand.hbm [shape: f32[2,4,2,128], index: 2, kind: input, shape index: {}]
  %s3 = inlined_call_operand.hbm [shape: f32[2,3,2,128], index: 3, kind: output, shape index: {}]
  %s4 = sld [smem:[#allocation0]]
  $region34: #{tpu_custom_call.1} parent=0
    _
  %s6 = ssub.s32 1, %s4
  %s7 = scalar_select 0, %s6, %s4
  $region1: #{tpu_custom_call.1} parent=0
    #allocation2 [shape = 'u8[2048]{0}', space=smem, size = 0x800, scoped, tag = 'input window, operand 0, single buffered']
    #allocation3 [shape = 's32[1]{0}', space=sflag, size = 0x4, scoped, tag = 'scoped memory for tpu_custom_call.1']
    #allocation4 [shape = 's32[1]{0}', space=sflag, size = 0x4, scoped, tag = 'scoped memory for tpu_custom_call.1']
    #allocation5 [shape = 's32[1]{0}', space=sflag, size = 0x4, scoped, tag = 'scoped memory for tpu_custom_call.1']
    #allocation6 [shape = 'u8[512]{0}', space=smem, size = 0x200, scoped, tag = 'input window, operand 1, single buffered']
    #allocation7 [shape = 's32[1]{0}', space=sflag, size = 0x4, scoped, tag = 'scoped memory for tpu_custom_call.1']
    #allocation8 [shape = 'u8[8192]{0}', space=vmem, size = 0x2000, scoped, tag = 'input window, operand 2, single buffered']
    #allocation9 [shape = 'u8[6144]{0}', space=vmem, size = 0x1800, scoped, tag = 'output window, operand 0, single buffered']
    %8 = vsyncpa [#allocation5], 0
    %9 = vsyncpa [#allocation7], 0
    %10 = vsyncpa [#allocation3], 0
    %11 = vsyncpa [#allocation4], 0
    // Predicated region
    $region2: #{tpu_custom_call.1} parent=1 // pred_check
      _
    $region3: #{tpu_custom_call.1} parent=1 // pred_check_branch
      %13 = sbr.rel (0) target = $region5
    $region4: #{tpu_custom_call.1} parent=1 // pred_region
      %15 = vsyncadd [#allocation5], 0
      %s17 = sshll.u32 %s0, 4
      %s18 = int_to_ptr.hbm [resolvable:$true] %s17
      %20 = dma.hbm_to_smem %s18, 64, [#allocation2], [#allocation5]
    $region5: #{tpu_custom_call.1} parent=1 // pred_fallthru
      _
    // Predicated region
    $region6: #{tpu_custom_call.1} parent=1 // pred_check
      _
    $region7: #{tpu_custom_call.1} parent=1 // pred_check_branch
      %22 = sbr.rel (0) target = $region9
    $region8: #{tpu_custom_call.1} parent=1 // pred_region
      %24 = vsyncadd [#allocation7], 0
      %s26 = sshll.u32 %s1, 4
      %s27 = int_to_ptr.hbm [resolvable:$true] %s26
      %29 = dma.hbm_to_smem %s27, 16, [#allocation6], [#allocation7]
    $region9: #{tpu_custom_call.1} parent=1 // pred_fallthru
      _
    // Predicated region
    $region10: #{tpu_custom_call.1} parent=1 // pred_check
      _
    $region11: #{tpu_custom_call.1} parent=1 // pred_check_branch
      %31 = sbr.rel (0) target = $region13
    $region12: #{tpu_custom_call.1} parent=1 // pred_region
      %33 = vsyncadd [#allocation3], 0
      %s34 = sshll.u32 %s2, 4
      %s35 = int_to_ptr.hbm [resolvable:$true] %s34
      %s36 = sshll.u32 [#allocation8], 4
      %s37 = int_to_ptr.vmem [resolvable:$true] %s36
      %42 = dma.hbm_to_vmem [thread:$0]  %s35, 256, %s37, [#allocation3], 32, 32, 2
    $region13: #{tpu_custom_call.1} parent=1 // pred_fallthru
      _
    // Predicated region
    $region14: #{tpu_custom_call.1} parent=1 // pred_check
      _
    $region15: #{tpu_custom_call.1} parent=1 // pred_check_branch
      %44 = sbr.rel (0) target = $region17
    $region16: #{tpu_custom_call.1} parent=1 // pred_region
      %46 = dma.done [#allocation5], 64
    $region17: #{tpu_custom_call.1} parent=1 // pred_fallthru
      _
    // Predicated region
    $region18: #{tpu_custom_call.1} parent=1 // pred_check
      _
    $region19: #{tpu_custom_call.1} parent=1 // pred_check_branch
      %48 = sbr.rel (0) target = $region21
    $region20: #{tpu_custom_call.1} parent=1 // pred_region
      %50 = dma.done [#allocation7], 16
    $region21: #{tpu_custom_call.1} parent=1 // pred_fallthru
      _
    // Predicated region
    $region22: #{tpu_custom_call.1} parent=1 // pred_check
      _
    $region23: #{tpu_custom_call.1} parent=1 // pred_check_branch
      %52 = sbr.rel (0) target = $region25
    $region24: #{tpu_custom_call.1} parent=1 // pred_region
      %54 = dma.done [#allocation3], 256
    $region25: #{tpu_custom_call.1} parent=1 // pred_fallthru
      _
    %55 = sfence
    %s56 = sld [smem:[#allocation2]]
    %v57 = vld [vmem:[#allocation8] sm:$0x3]
    %v58 = vstv %s56
    %v59 = vmul.f32 %v58, %v57
    %s60 = sld [smem:[#allocation2 + $0x1]]
    %s61 = scalar_lea.vmem [#allocation8], 2
    %v62 = vld [vmem:[%s61] sm:$0x3]
    %v63 = vstv %s60
    %v64 = vmul.f32 %v63, %v62
    %v65 = vadd.f32 %v59, %v64
    %s66 = sld [smem:[#allocation2 + $0x2]]
    %s67 = scalar_lea.vmem [#allocation8], 4
    %v68 = vld [vmem:[%s67] sm:$0x3]
    %v69 = vstv %s66
    %v70 = vmul.f32 %v69, %v68
    %v71 = vadd.f32 %v65, %v70
    %s72 = sld [smem:[#allocation2 + $0x3]]
    %s73 = scalar_lea.vmem [#allocation8], 6
    %v74 = vld [vmem:[%s73] sm:$0x3]
    %v75 = vstv %s72
    %v76 = vmul.f32 %v75, %v74
    %v77 = vadd.f32 %v71, %v76
    %s78 = sld [smem:[#allocation6]]
    %v79 = vstv %s78
    %v80 = vadd.f32 %v77, %v79
    %81 = vst [vmem:[#allocation9] sm:$0x3] %v80
    %s82 = sld [smem:[#allocation2 + $0x80]]
    %v83 = vld [vmem:[#allocation8] sm:$0x3]
    %v84 = vstv %s82
    %v85 = vmul.f32 %v84, %v83
    %s86 = sld [smem:[#allocation2 + $0x81]]
    %v87 = vld [vmem:[%s61] sm:$0x3]
    %v88 = vstv %s86
    %v89 = vmul.f32 %v88, %v87
    %v90 = vadd.f32 %v85, %v89
    %s91 = sld [smem:[#allocation2 + $0x82]]
    %v92 = vld [vmem:[%s67] sm:$0x3]
    %v93 = vstv %s91
    %v94 = vmul.f32 %v93, %v92
    %v95 = vadd.f32 %v90, %v94
    %s96 = sld [smem:[#allocation2 + $0x83]]
    %v97 = vld [vmem:[%s73] sm:$0x3]
    %v98 = vstv %s96
    %v99 = vmul.f32 %v98, %v97
    %v100 = vadd.f32 %v95, %v99
    %s101 = sld [smem:[#allocation6 + $0x1]]
    %v102 = vstv %s101
    %v103 = vadd.f32 %v100, %v102
    %s104 = scalar_lea.vmem [#allocation9], 2
    %105 = vst [vmem:[%s104] sm:$0x3] %v103
    %s106 = sld [smem:[#allocation2 + $0x100]]
    %v107 = vld [vmem:[#allocation8] sm:$0x3]
    %v108 = vstv %s106
    %v109 = vmul.f32 %v108, %v107
    %s110 = sld [smem:[#allocation2 + $0x101]]
    %v111 = vld [vmem:[%s61] sm:$0x3]
    %v112 = vstv %s110
    %v113 = vmul.f32 %v112, %v111
    %v114 = vadd.f32 %v109, %v113
    %s115 = sld [smem:[#allocation2 + $0x102]]
    %v116 = vld [vmem:[%s67] sm:$0x3]
    %v117 = vstv %s115
    %v118 = vmul.f32 %v117, %v116
    %v119 = vadd.f32 %v114, %v118
    %s120 = sld [smem:[#allocation2 + $0x103]]
    %v121 = vld [vmem:[%s73] sm:$0x3]
    %v122 = vstv %s120
    %v123 = vmul.f32 %v122, %v121
    %v124 = vadd.f32 %v119, %v123
    %s125 = sld [smem:[#allocation6 + $0x2]]
    %v126 = vstv %s125
    %v127 = vadd.f32 %v124, %v126
    %s128 = scalar_lea.vmem [#allocation9], 4
    %129 = vst [vmem:[%s128] sm:$0x3] %v127
    %s130 = sld [smem:[#allocation2]]
    %s131 = scalar_lea.vmem [#allocation8], 8
    %v132 = vld [vmem:[%s131] sm:$0x3]
    %v133 = vstv %s130
    %v134 = vmul.f32 %v133, %v132
    %s135 = sld [smem:[#allocation2 + $0x1]]
    %s136 = scalar_lea.vmem [#allocation8], 10
    %v137 = vld [vmem:[%s136] sm:$0x3]
    %v138 = vstv %s135
    %v139 = vmul.f32 %v138, %v137
    %v140 = vadd.f32 %v134, %v139
    %s141 = sld [smem:[#allocation2 + $0x2]]
    %s142 = scalar_lea.vmem [#allocation8], 12
    %v143 = vld [vmem:[%s142] sm:$0x3]
    %v144 = vstv %s141
    %v145 = vmul.f32 %v144, %v143
    %v146 = vadd.f32 %v140, %v145
    %s147 = sld [smem:[#allocation2 + $0x3]]
    %s148 = scalar_lea.vmem [#allocation8], 14
    %v149 = vld [vmem:[%s148] sm:$0x3]
    %v150 = vstv %s147
    %v151 = vmul.f32 %v150, %v149
    %v152 = vadd.f32 %v146, %v151
    %s153 = sld [smem:[#allocation6]]
    %v154 = vstv %s153
    %v155 = vadd.f32 %v152, %v154
    %s156 = scalar_lea.vmem [#allocation9], 6
    %157 = vst [vmem:[%s156] sm:$0x3] %v155
    %s158 = sld [smem:[#allocation2 + $0x80]]
    %v159 = vld [vmem:[%s131] sm:$0x3]
    %v160 = vstv %s158
    %v161 = vmul.f32 %v160, %v159
    %s162 = sld [smem:[#allocation2 + $0x81]]
    %v163 = vld [vmem:[%s136] sm:$0x3]
    %v164 = vstv %s162
    %v165 = vmul.f32 %v164, %v163
    %v166 = vadd.f32 %v161, %v165
    %s167 = sld [smem:[#allocation2 + $0x82]]
    %v168 = vld [vmem:[%s142] sm:$0x3]
    %v169 = vstv %s167
    %v170 = vmul.f32 %v169, %v168
    %v171 = vadd.f32 %v166, %v170
    %s172 = sld [smem:[#allocation2 + $0x83]]
    %v173 = vld [vmem:[%s148] sm:$0x3]
    %v174 = vstv %s172
    %v175 = vmul.f32 %v174, %v173
    %v176 = vadd.f32 %v171, %v175
    %s177 = sld [smem:[#allocation6 + $0x1]]
    %v178 = vstv %s177
    %v179 = vadd.f32 %v176, %v178
    %s180 = scalar_lea.vmem [#allocation9], 8
    %181 = vst [vmem:[%s180] sm:$0x3] %v179
    %s182 = sld [smem:[#allocation2 + $0x100]]
    %v183 = vld [vmem:[%s131] sm:$0x3]
    %v184 = vstv %s182
    %v185 = vmul.f32 %v184, %v183
    %s186 = sld [smem:[#allocation2 + $0x101]]
    %v187 = vld [vmem:[%s136] sm:$0x3]
    %v188 = vstv %s186
    %v189 = vmul.f32 %v188, %v187
    %v190 = vadd.f32 %v185, %v189
    %s191 = sld [smem:[#allocation2 + $0x102]]
    %v192 = vld [vmem:[%s142] sm:$0x3]
    %v193 = vstv %s191
    %v194 = vmul.f32 %v193, %v192
    %v195 = vadd.f32 %v190, %v194
    %s196 = sld [smem:[#allocation2 + $0x103]]
    %v197 = vld [vmem:[%s148] sm:$0x3]
    %v198 = vstv %s196
    %v199 = vmul.f32 %v198, %v197
    %v200 = vadd.f32 %v195, %v199
    %s201 = sld [smem:[#allocation6 + $0x2]]
    %v202 = vstv %s201
    %v203 = vadd.f32 %v200, %v202
    %s204 = scalar_lea.vmem [#allocation9], 10
    %205 = vst [vmem:[%s204] sm:$0x3] %v203
    // Predicated region
    $region26: #{tpu_custom_call.1} parent=1 // pred_check
      _
    $region27: #{tpu_custom_call.1} parent=1 // pred_check_branch
      %207 = sbr.rel (0) target = $region29
    $region28: #{tpu_custom_call.1} parent=1 // pred_region
      %209 = vsyncadd [#allocation4], 0
      %s210 = sshll.u32 [#allocation9], 4
      %s211 = int_to_ptr.vmem [resolvable:$true] %s210
      %s212 = sshll.u32 %s3, 4
      %s213 = int_to_ptr.hbm [resolvable:$true] %s212
      %218 = dma.vmem_to_hbm [thread:$0]  %s211, 192, %s213, [#allocation4], 32, 32, 2
    $region29: #{tpu_custom_call.1} parent=1 // pred_fallthru
      _
    // Predicated region
    $region30: #{tpu_custom_call.1} parent=1 // pred_check
      _
    $region31: #{tpu_custom_call.1} parent=1 // pred_check_branch
      %220 = sbr.rel (0) target = $region33
    $region32: #{tpu_custom_call.1} parent=1 // pred_region
      %222 = dma.done [#allocation4], 192
    $region33: #{tpu_custom_call.1} parent=1 // pred_fallthru
      _
    %223 = vsyncpa [#allocation3], 1
    %224 = vsyncpa [#allocation4], 1
    %225 = vsyncpa [#allocation5], 1
    %226 = vsyncpa [#allocation7], 1

</llo_original>
